<compile_context>
chip_gen: v5e
topology: v5e:2x2
jax: 0.10.0
libtpu: 0.0.40
codegen_flags: <defaults>
</compile_context>

<pallas_src>
import jax
import jax.numpy as jnp
from jax.experimental import pallas as pl
from jax.experimental.pallas import tpu as pltpu


def _pixel_attention_kernel(w_ref, b_ref, x_ref, o_ref):
    # w_ref, b_ref: (1,) SMEM f32 scalars (1x1 conv weight / bias on the 1-ch max map)
    # x_ref, o_ref: (NB, C, R_TILE, L) VMEM tiles (spatial on sublane/lane grid)
    x = x_ref[...]                                        # native dtype, no f32 copy
    m = jnp.max(x, axis=1, keepdims=True)                 # (NB,1,R_TILE,L) VPU max
    mf = m.astype(jnp.float32)                            # upcast only the 1-ch map
    scale = jax.nn.sigmoid(mf * w_ref[0] + b_ref[0])      # 1x1 conv + sigmoid (EUP)
    o_ref[...] = (x * scale.astype(x.dtype)).astype(o_ref.dtype)


def _chip_budget():
    """(target_block_bytes, default vmem_limit_bytes, physical vmem) per generation."""
    mib = 1024 * 1024
    try:
        vmem_phys = int(pltpu.get_tpu_info().vmem_capacity_bytes)
    except Exception:  # fall back to v5e/v6e-class numbers
        vmem_phys = 128 * mib
    if vmem_phys <= 64 * mib:
        # v7x-class: fastest HBM, least VMEM -> biggest blocks, headroom under 64 MiB.
        return 9 * mib, 48 * mib, vmem_phys
    # v5e / v6e: 128 MiB physical, 16/32 MiB scoped default -> raise limit explicitly.
    return 8 * mib, 64 * mib, vmem_phys


def pixel_attention(x_nchw, conv_w, conv_b, *, donate_x=False):
    """PixelAttention forward.  x: (N,C,H,W); conv_w: (1,1,1,1); conv_b: (1,)."""
    N, C, H, W = x_nchw.shape
    HW = H * W
    dtype = x_nchw.dtype
    itemsize = jnp.dtype(dtype).itemsize

    # Sub-32-bit dtypes pack along sublanes: dtype-aware second-minor multiple.
    sub_mult = {4: 8, 2: 16, 1: 32}.get(itemsize, 8)

    # ---- lane-dense view with ZERO data movement ----------------------------
    if HW % 128 == 0:
        R, L = HW // 128, 128                 # free contiguous reshape, fully lane-dense
        x = x_nchw.reshape(N, C, R, L)
    else:
        R, L = H, W                           # natural layout; lanes = W
        x = x_nchw
        # TODO(synk): W < 128 gives lane-masked stores; still far cheaper than a
        # pad + slice, which would add a full extra HBM read+write of x.

    target_block_bytes, vmem_limit, vmem_phys = _chip_budget()

    # ---- rows (second-minor) per block --------------------------------------
    row_bytes = C * L * itemsize
    r_tile = max(1, target_block_bytes // row_bytes)
    if r_tile >= R or R <= sub_mult:
        r_tile = R                                            # full dim: always legal
    else:
        r_tile = max(sub_mult, (r_tile // sub_mult) * sub_mult)

    # ---- pack batch elements per step (ragged last block is masked) ---------
    nb = max(1, min(N, target_block_bytes // max(1, C * r_tile * L * itemsize)))

    # ---- keep enough grid steps for megacore sharding / DMA overlap ---------
    min_r_tile = R if R <= sub_mult else sub_mult
    max_steps = N * pl.cdiv(R, min_r_tile)
    want_steps = min(4, max_steps)
    while pl.cdiv(N, nb) * pl.cdiv(R, r_tile) < want_steps:
        if nb > 1:
            nb = max(1, nb // 2)
        elif r_tile > min_r_tile:
            new_r = max(min_r_tile, ((r_tile // 2) // sub_mult) * sub_mult)
            if new_r == r_tile:
                break
            r_tile = new_r
        else:
            break

    block = (nb, C, r_tile, L)
    block_bytes = nb * C * r_tile * L * itemsize
    # Live footprint ~= 2x in + 2x out double buffers; raise the scoped VMEM limit
    # explicitly (v5e default is only 16 MiB), capped at physical VMEM.
    # TODO(synk): if a single (1, C, sub_mult, L) block exceeds physical VMEM (huge C),
    # a C-tiled two-pass (max accumulate over an "arbitrary" C axis, then apply
    # scale) would be required; here we only clamp tiles and raise the limit.
    vmem_limit = min(max(vmem_limit, 4 * block_bytes + (2 << 20)), vmem_phys)

    grid = (pl.cdiv(N, nb), pl.cdiv(R, r_tile))

    w = conv_w.reshape(1).astype(jnp.float32)
    b = conv_b.reshape(1).astype(jnp.float32)

    cost = pl.CostEstimate(
        flops=2 * N * C * H * W,              # channel max + scale multiply
        transcendentals=N * H * W,            # one sigmoid per spatial position
        bytes_accessed=2 * N * C * H * W * itemsize,
    )

    out = pl.pallas_call(
        _pixel_attention_kernel,
        out_shape=jax.ShapeDtypeStruct((N, C, R, L), dtype),
        grid=grid,
        in_specs=[
            pl.BlockSpec(memory_space=pltpu.SMEM),                  # w
            pl.BlockSpec(memory_space=pltpu.SMEM),                  # b
            pl.BlockSpec(block, lambda n, r: (n, 0, r, 0)),         # x tile
        ],
        out_specs=pl.BlockSpec(block, lambda n, r: (n, 0, r, 0)),
        compiler_params=pltpu.CompilerParams(
            dimension_semantics=("parallel", "parallel"),
            vmem_limit_bytes=int(vmem_limit),
        ),
        cost_estimate=cost,
        input_output_aliases=({2: 0} if donate_x else {}),
    )(w, b, x)

    return out.reshape(N, C, H, W)


def pixel_attention_ref(x_nchw, conv_w, conv_b):
    """Pure-JAX reference for validation."""
    max_out = jnp.max(x_nchw, axis=1, keepdims=True)
    scale = jax.nn.sigmoid(max_out * conv_w.reshape(()) + conv_b.reshape(()))
    return x_nchw * scale


if __name__ == "__main__":
    key = jax.random.PRNGKey(0)
    kx, kw, kb = jax.random.split(key, 3)

    N, C, H, W = 2, 4, 16, 16
    x = jax.random.normal(kx, (N, C, H, W), dtype=jnp.float32)

    # Deterministic "conv1" parameters (1x1 conv on the 1-channel max map).
    conv_w = jax.random.normal(kw, (1, 1, 1, 1), dtype=jnp.float32) * 0.5
    conv_b = jax.random.normal(kb, (1,), dtype=jnp.float32) * 0.1

    out = pixel_attention(x, conv_w, conv_b)
    out = jax.block_until_ready(out)

    ref = pixel_attention_ref(x, conv_w, conv_b)
    assert out.shape == (N, C, H, W)
    assert jnp.allclose(out, ref, atol=1e-5, rtol=1e-5)

    print("KERNEL_OK")
</pallas_src>

<mosaic_0001>
module attributes {stable_mosaic.version = 11 : i64} {
  func.func @_pixel_attention_kernel(%arg0: i32, %arg1: i32, %arg2: memref<1xf32, #tpu.memory_space<smem>>, %arg3: memref<1xf32, #tpu.memory_space<smem>>, %arg4: memref<1x4x2x128xf32, #tpu.memory_space<vmem>>, %arg5: memref<1x4x2x128xf32, #tpu.memory_space<vmem>>) attributes {dimension_semantics = [#tpu.dimension_semantics<parallel>, #tpu.dimension_semantics<parallel>], iteration_bounds = array<i64: 2, 1>, scalar_prefetch = 0 : i64, scratch_operands = 0 : i64, tpu.core_type = #tpu.core_type<tc>, window_params = [{transform_indices = @transform_0, window_bounds = array<i64: 1>}, {transform_indices = @transform_1, window_bounds = array<i64: 1>}, {transform_indices = @transform_2, window_bounds = array<i64: 1, 4, 2, 128>}, {transform_indices = @transform_3, window_bounds = array<i64: 1, 4, 2, 128>}]} {
    %c0 = arith.constant 0 : index
    %c0_0 = arith.constant 0 : index
    %c0_1 = arith.constant 0 : index
    %c0_2 = arith.constant 0 : index
    %0 = vector.load %arg4[%c0, %c0_0, %c0_1, %c0_2] : memref<1x4x2x128xf32, #tpu.memory_space<vmem>>, vector<1x4x2x128xf32>
    %cst = arith.constant dense<0xFF800000> : vector<1x2x128xf32>
    %1 = vector.multi_reduction <maximumf>, %0, %cst [1] : vector<1x4x2x128xf32> to vector<1x2x128xf32>
    %2 = vector.shape_cast %1 : vector<1x2x128xf32> to vector<1x1x2x128xf32>
    %c0_3 = arith.constant 0 : index
    %3 = memref.load %arg2[%c0_3] : memref<1xf32, #tpu.memory_space<smem>>
    %4 = vector.broadcast %3 : f32 to vector<1x1x2x128xf32>
    %5 = arith.mulf %2, %4 : vector<1x1x2x128xf32>
    %c0_4 = arith.constant 0 : index
    %6 = memref.load %arg3[%c0_4] : memref<1xf32, #tpu.memory_space<smem>>
    %7 = vector.broadcast %6 : f32 to vector<1x1x2x128xf32>
    %8 = arith.addf %5, %7 : vector<1x1x2x128xf32>
    %9 = arith.negf %8 : vector<1x1x2x128xf32>
    %10 = math.exp %9 : vector<1x1x2x128xf32>
    %cst_5 = arith.constant 1.000000e+00 : f32
    %11 = vector.broadcast %cst_5 : f32 to vector<1x1x2x128xf32>
    %12 = arith.addf %11, %10 : vector<1x1x2x128xf32>
    %13 = arith.divf %11, %12 : vector<1x1x2x128xf32>
    %14 = vector.broadcast %13 : vector<1x1x2x128xf32> to vector<1x4x2x128xf32>
    %15 = arith.mulf %0, %14 : vector<1x4x2x128xf32>
    %c0_6 = arith.constant 0 : index
    %c0_7 = arith.constant 0 : index
    %c0_8 = arith.constant 0 : index
    %c0_9 = arith.constant 0 : index
    %16 = vector.load %arg5[%c0_6, %c0_7, %c0_8, %c0_9] : memref<1x4x2x128xf32, #tpu.memory_space<vmem>>, vector<1x4x2x128xf32>
    tpu.vector_store %arg5[%c0_6, %c0_7, %c0_8, %c0_9], %15 {strides = array<i32>} : memref<1x4x2x128xf32, #tpu.memory_space<vmem>>, vector<1x4x2x128xf32>,
    return
  }
  func.func @transform_0(%arg0: i32, %arg1: i32) -> i32 {
    %c0_i32 = arith.constant 0 : i32
    %c0_i32_0 = arith.constant 0 : i32
    return %c0_i32 : i32
  }
  func.func @transform_1(%arg0: i32, %arg1: i32) -> i32 {
    %c0_i32 = arith.constant 0 : i32
    %c0_i32_0 = arith.constant 0 : i32
    return %c0_i32 : i32
  }
  func.func @transform_2(%arg0: i32, %arg1: i32) -> (i32, i32, i32, i32) {
    %c0_i32 = arith.constant 0 : i32
    %c0_i32_0 = arith.constant 0 : i32
    %c0_i32_1 = arith.constant 0 : i32
    return %arg0, %c0_i32, %arg1, %c0_i32_0 : i32, i32, i32, i32
  }
  func.func @transform_3(%arg0: i32, %arg1: i32) -> (i32, i32, i32, i32) {
    %c0_i32 = arith.constant 0 : i32
    %c0_i32_0 = arith.constant 0 : i32
    %c0_i32_1 = arith.constant 0 : i32
    return %arg0, %c0_i32, %arg1, %c0_i32_0 : i32, i32, i32, i32
  }
}

</mosaic_0001>

<llo_original>
// kernel: tpu_custom_call.1
$region0: #{tpu_custom_call.1}
  #allocation0 [shape = 'u32[]', space=smem, size = 0x4, offset = 0x4, fixed_abs, tag = 'smem constant byte address 0x4 - core index']
  #allocation1 [shape = 'u32[72,128]{1,0:T(1,128)}', space=vmem, size = 0x9000, scoped, tag = 'internal scratch']
  #allocation2 [shape = 'f32[1]{0:T(128)S(6)}', space=smem, size = 0x200, scoped, tag = 'scoped memory for tpu_custom_call.1']
  #allocation3 [shape = 'f32[1]{0:T(128)S(6)}', space=smem, size = 0x200, scoped, tag = 'scoped memory for tpu_custom_call.1']
  %s0 = inlined_call_operand.<no memory space> [shape: f32[1], index: 0, kind: input, shape index: {}]
  %s1 = inlined_call_operand.<no memory space> [shape: f32[1], index: 1, kind: input, shape index: {}]
  %s2 = inlined_call_operand.hbm [shape: f32[2,4,2,128], index: 2, kind: input, shape index: {}]
  %s3 = inlined_call_operand.hbm [shape: f32[2,4,2,128], index: 3, kind: output, shape index: {}]
  %s4 = sld [smem:[#allocation0]]
  $region49: #{tpu_custom_call.1} parent=0
    _
  %s6 = ssub.s32 1, %s4
  %s7 = scalar_select 0, %s6, %s4
  %8 = sst [smem:[#allocation2]] %s0
  %9 = sst [smem:[#allocation3]] %s1
  $region1: #{tpu_custom_call.1} parent=0
    #allocation4 [shape = 'u8[8192]{0}', space=vmem, size = 0x2000, scoped, tag = 'input window, operand 2']
    #allocation5 [shape = 's32[2]{0}', space=sflag, size = 0x8, scoped, tag = 'scoped memory for tpu_custom_call.1']
    #allocation6 [shape = 's32[2]{0}', space=sflag, size = 0x8, scoped, tag = 'scoped memory for tpu_custom_call.1']
    #allocation7 [shape = 'u8[8192]{0}', space=vmem, size = 0x2000, scoped, tag = 'output window, operand 0']
    %10 = vsyncpa [#allocation5], 0
    %s11 = scalar_lea.sflag [#allocation5], 1
    %12 = vsyncpa %s11, 0
    %13 = vsyncpa [#allocation6], 0
    %s14 = scalar_lea.sflag [#allocation6], 1
    %15 = vsyncpa %s14, 0
    loop: start=0, step=1, limit=4
    $region2: #{tpu_custom_call.1} parent=1 // loop_pre_header
      _
    $region3: #{tpu_custom_call.1} parent=1 // loop_header
      %s17 = sphi 0, %s21
      %p18 = scmp.ge.s32.totalorder %s17, 4
      %s24 = sphi 0, %s36
      %s25 = sphi 0, %s32
      %s26 = sphi 0, %s24
      %s27 = sphi 0, %s25
      %s28 = sphi 0, %s26
      %s29 = sphi 0, %s27
      %s37 = sphi 0, %s37
      %s39 = sphi 0, %s37
      %s40 = sphi 0, %s39
      %s54 = sphi 0, %s40
      %s58 = sphi 0, %s58
      %s60 = sphi 0, %s58
      %s61 = sphi 0, %s60
      %s75 = sphi 0, %s61
      %s83 = sphi 0, %s85
      %s86 = sphi 0, %s83
      %s87 = sphi 0, %s86
      %s103 = sphi 0, %s87
      %s111 = sphi 0, %s113
      %s114 = sphi 0, %s111
      %s115 = sphi 0, %s114
      %s131 = sphi 0, %s115
    $region4: #{tpu_custom_call.1} parent=1 // loop_header_branch
      %20 = sbr.rel (%p18) target = $region8
    $region5: #{tpu_custom_call.1} parent=1 // loop_body
      %s22 = ssub.s32 %s17, 1
      %s23 = ssub.s32 %s17, 2
      %s30 = sadd.s32 1, %s25
      %p31 = scmp.ge.s32.totalorder %s30, 1
      %s32 = scalar_select %p31, 0, %s30
      %s33 = sadd.s32 1, %s24
      %s34 = scalar_select %p31, %s33, %s24
      %p35 = scmp.ge.s32.totalorder %s34, 2
      %s36 = scalar_select %p35, 0, %s34
      %s38 = sadd.s32 %s37, 1
      %p41 = scmp.eq.s32.totalorder %s17, 1
      %p42 = scmp.ne.s32.totalorder %s37, %s39
      %p43 = scmp.eq.s32.totalorder %s17, 0
      %p44 = por %p42, %p43
      %p45 = scmp.ne.s32.totalorder %s37, %s39
      %p46 = scmp.eq.s32.totalorder %s22, 1
      %p47 = por %p45, %p46
      %p48 = scmp.ne.s32.totalorder %s39, %s40
      %p49 = scmp.eq.s32.totalorder %s22, 0
      %p50 = por %p48, %p49
      %p51 = scmp.ne.s32.totalorder %s39, %s40
      %p52 = scmp.eq.s32.totalorder %s23, 1
      %p53 = por %p51, %p52
      %p55 = scmp.ne.s32.totalorder %s40, %s54
      %p56 = scmp.eq.s32.totalorder %s23, 0
      %p57 = por %p55, %p56
      %s59 = sadd.s32 %s58, 1
      %p62 = scmp.eq.s32.totalorder %s17, 1
      %p63 = scmp.ne.s32.totalorder %s58, %s60
      %p64 = scmp.eq.s32.totalorder %s17, 0
      %p65 = por %p63, %p64
      %p66 = scmp.ne.s32.totalorder %s58, %s60
      %p67 = scmp.eq.s32.totalorder %s22, 1
      %p68 = por %p66, %p67
      %p69 = scmp.ne.s32.totalorder %s60, %s61
      %p70 = scmp.eq.s32.totalorder %s22, 0
      %p71 = por %p69, %p70
      %p72 = scmp.ne.s32.totalorder %s60, %s61
      %p73 = scmp.eq.s32.totalorder %s23, 1
      %p74 = por %p72, %p73
      %p76 = scmp.ne.s32.totalorder %s61, %s75
      %p77 = scmp.eq.s32.totalorder %s23, 0
      %p78 = por %p76, %p77
      %s79 = ssub.s32 %s24, %s36
      %s80 = ssub.s32 %s25, %s32
      %s81 = sor.u32 %s79, %s80
      %p82 = scmp.eq.s32.totalorder %s81, 0
      %s84 = sadd.s32 %s83, 1
      %s85 = scalar_select %p82, %s83, %s84
      %p88 = pneg %p82
      %p89 = scmp.eq.s32.totalorder %s17, 1
      %p90 = por %p88, %p89
      %p91 = scmp.ne.s32.totalorder %s83, %s86
      %p92 = scmp.eq.s32.totalorder %s17, 0
      %p93 = por %p91, %p92
      %p94 = scmp.ne.s32.totalorder %s83, %s86
      %p95 = scmp.eq.s32.totalorder %s22, 1
      %p96 = por %p94, %p95
      %p97 = scmp.ne.s32.totalorder %s86, %s87
      %p98 = scmp.eq.s32.totalorder %s22, 0
      %p99 = por %p97, %p98
      %p100 = scmp.ne.s32.totalorder %s86, %s87
      %p101 = scmp.eq.s32.totalorder %s23, 1
      %p102 = por %p100, %p101
      %p104 = scmp.ne.s32.totalorder %s87, %s103
      %p105 = scmp.eq.s32.totalorder %s23, 0
      %p106 = por %p104, %p105
      %s107 = ssub.s32 %s24, %s36
      %s108 = ssub.s32 %s25, %s32
      %s109 = sor.u32 %s107, %s108
      %p110 = scmp.eq.s32.totalorder %s109, 0
      %s112 = sadd.s32 %s111, 1
      %s113 = scalar_select %p110, %s111, %s112
      %p116 = pneg %p110
      %p117 = scmp.eq.s32.totalorder %s17, 1
      %p118 = por %p116, %p117
      %p119 = scmp.ne.s32.totalorder %s111, %s114
      %p120 = scmp.eq.s32.totalorder %s17, 0
      %p121 = por %p119, %p120
      %p122 = scmp.ne.s32.totalorder %s111, %s114
      %p123 = scmp.eq.s32.totalorder %s22, 1
      %p124 = por %p122, %p123
      %p125 = scmp.ne.s32.totalorder %s114, %s115
      %p126 = scmp.eq.s32.totalorder %s22, 0
      %p127 = por %p125, %p126
      %p128 = scmp.ne.s32.totalorder %s114, %s115
      %p129 = scmp.eq.s32.totalorder %s23, 1
      %p130 = por %p128, %p129
      %p132 = scmp.ne.s32.totalorder %s115, %s131
      %p133 = scmp.eq.s32.totalorder %s23, 0
      %p134 = por %p132, %p133
      %p135 = scmp.le.s32.totalorder 1, %s17
      %p136 = scmp.lt.s32.totalorder %s17, 3
      %p137 = pnand %p135, %p136
      %p138 = pneg %p137
      // Predicated region
      $region9: #{tpu_custom_call.1} parent=5 // pred_check
        _
      $region10: #{tpu_custom_call.1} parent=5 // pred_check_branch
        %140 = sbr.rel (%p137) target = $region12
      $region11: #{tpu_custom_call.1} parent=5 // pred_region
        %s141 = ssub.s32 %s17, 1
        // Predicated region
        $region13: #{tpu_custom_call.1} parent=11 // pred_check
          %p142 = pneg %p50
        $region14: #{tpu_custom_call.1} parent=11 // pred_check_branch
          %144 = sbr.rel (%p142) target = $region16
        $region15: #{tpu_custom_call.1} parent=11 // pred_region
          _
        $region16: #{tpu_custom_call.1} parent=11 // pred_fallthru
          _
        // Predicated region
        $region17: #{tpu_custom_call.1} parent=11 // pred_check
          %p145 = pneg %p71
        $region18: #{tpu_custom_call.1} parent=11 // pred_check_branch
          %147 = sbr.rel (%p145) target = $region20
        $region19: #{tpu_custom_call.1} parent=11 // pred_region
          _
        $region20: #{tpu_custom_call.1} parent=11 // pred_fallthru
          _
      $region12: #{tpu_custom_call.1} parent=5 // pred_fallthru
        _
      %p148 = scmp.lt.s32.totalorder %s17, 2
      // Predicated region
      $region21: #{tpu_custom_call.1} parent=5 // pred_check
        %p149 = pneg %p148
      $region22: #{tpu_custom_call.1} parent=5 // pred_check_branch
        %151 = sbr.rel (%p149) target = $region24
      $region23: #{tpu_custom_call.1} parent=5 // pred_region
        // Predicated region
        $region25: #{tpu_custom_call.1} parent=23 // pred_check
          %p152 = pneg %p93
        $region26: #{tpu_custom_call.1} parent=23 // pred_check_branch
          %154 = sbr.rel (%p152) target = $region28
        $region27: #{tpu_custom_call.1} parent=23 // pred_region
          %s155 = sand.u32 %s83, 1
          %s156 = scalar_lea.sflag [#allocation5], %s155
          %s157 = sand.u32 %s83, 1
          %s158 = smul.addr %s157, 8
          %s159 = scalar_lea.vmem [#allocation4], %s158
          %161 = vsyncadd %s156, 0
          %s162 = smul.addr %s24, 4
          %s163 = sadd.s32 %s25, %s162
          %s164 = smul.addr %s163, 2
          %s165 = scalar_lea.hbm %s2, %s164
          %s166 = sshll.u32 %s165, 4
          %s167 = int_to_ptr.hbm [resolvable:$true] %s166
          %s168 = sshll.u32 %s159, 4
          %s169 = int_to_ptr.vmem [resolvable:$true] %s168
          %174 = dma.hbm_to_vmem [thread:$0]  %s167, 128, %s169, %s156, 32, 32, 2
        $region28: #{tpu_custom_call.1} parent=23 // pred_fallthru
          _
      $region24: #{tpu_custom_call.1} parent=5 // pred_fallthru
        _
      %p175 = scmp.le.s32.totalorder 1, %s17
      %p176 = scmp.lt.s32.totalorder %s17, 3
      %p177 = pnand %p175, %p176
      %p178 = pneg %p177
      // Predicated region
      $region29: #{tpu_custom_call.1} parent=5 // pred_check
        _
      $region30: #{tpu_custom_call.1} parent=5 // pred_check_branch
        %180 = sbr.rel (%p177) target = $region32
      $region31: #{tpu_custom_call.1} parent=5 // pred_region
        %s181 = ssub.s32 %s17, 1
        %s182 = sand.u32 %s86, 1
        %s183 = scalar_lea.sflag [#allocation5], %s182
        %s184 = sand.u32 %s86, 1
        %s185 = smul.addr %s184, 8
        %s186 = scalar_lea.vmem [#allocation4], %s185
        // Predicated region
        $region33: #{tpu_custom_call.1} parent=31 // pred_check
          %p187 = pneg %p99
        $region34: #{tpu_custom_call.1} parent=31 // pred_check_branch
          %189 = sbr.rel (%p187) target = $region36
        $region35: #{tpu_custom_call.1} parent=31 // pred_region
          %191 = dma.done %s183, 128
        $region36: #{tpu_custom_call.1} parent=31 // pred_fallthru
          _
        %p192 = pneg %p50
        %p193 = pneg %p47
        %p194 = pneg %p71
        %p195 = pneg %p68
        %s196 = sand.u32 %s86, 1
        %s197 = scalar_lea.sflag [#allocation5], %s196
        %s198 = sand.u32 %s86, 1
        %s199 = smul.addr %s198, 8
        %s200 = scalar_lea.vmem [#allocation4], %s199
        %p201 = pneg %p99
        %p202 = pneg %p96
        %p203 = pneg %p127
        %p204 = pneg %p124
        %s205 = sand.u32 %s114, 1
        %s206 = scalar_lea.sflag [#allocation6], %s205
        %s207 = sand.u32 %s114, 1
        %s208 = smul.addr %s207, 8
        %s209 = scalar_lea.vmem [#allocation7], %s208
        %v210 = vld [vmem:[%s186] sm:$0x3]
        %v211 = vld [vmem:[%s186 + $0x2] sm:$0x3]
        %v212 = vld [vmem:[%s186 + $0x4] sm:$0x3]
        %v213 = vld [vmem:[%s186 + $0x6] sm:$0x3]
        %vm214 = vcmask 1041408
        %v215 = vsel %vm214, %v210, -inf
        %v216 = vsel %vm214, %v211, -inf
        %v217 = vsel %vm214, %v212, -inf
        %v218 = vsel %vm214, %v213, -inf
        %v219 = vmax.f32 %v215, %v216
        %v220 = vmax.f32 %v217, %v218
        %v221 = vmax.f32 %v219, %v220
        %s222 = sld [smem:[#allocation2]]
        %v223 = vstv %s222
        %v224 = vmul.f32 %v221, %v223
        %s225 = sld [smem:[#allocation3]]
        %v226 = vstv %s225
        %v227 = vadd.f32 %v224, %v226
        %v228 = vxor.u32 %v227, 2147483648
        %v229 = vmul.f32 %v228, 1.442695
        %v230 = vpow.pop %v229
        %v231 = vadd.f32 %v230, 1.0
        %v232 = vrcp.pop %v231
        %v233 = vmul.f32 %v231, %v232
        %v234 = vsub.f32 1.0, %v233
        %v235 = vmul.f32 %v232, %v234
        %v236 = vadd.f32 %v232, %v235
        %vm237 = vweird.f32 %v231
        %vm238 = vweird.f32 %v232
        %vm239 = vmor %vm237, %vm238
        %v240 = vsel %vm239, %v232, %v236
        %v241 = vand.u32 2147483647, %v231
        %vm242 = vcmp.eq.f32.partialorder %v241, 8.507059e+37
        %v243 = vand.u32 %v231, 2147483648
        %v244 = vor.u32 1.1754944e-38, %v243
        %v245 = vsel %vm242, %v244, %v240
        %v246 = vmul.f32 1.0, %v245
        %v247 = vmul.f32 %v210, %v246
        %v248 = vmul.f32 %v211, %v246
        %v249 = vmul.f32 %v212, %v246
        %v250 = vmul.f32 %v213, %v246
        %251 = vst [vmem:[%s209] sm:$0x3] %v247
        %252 = vst [vmem:[%s209 + $0x2] sm:$0x3] %v248
        %253 = vst [vmem:[%s209 + $0x4] sm:$0x3] %v249
        %254 = vst [vmem:[%s209 + $0x6] sm:$0x3] %v250
        %s255 = sand.u32 %s114, 1
        %s256 = scalar_lea.sflag [#allocation6], %s255
        %s257 = sand.u32 %s114, 1
        %s258 = smul.addr %s257, 8
        %s259 = scalar_lea.vmem [#allocation7], %s258
        // Predicated region
        $region37: #{tpu_custom_call.1} parent=31 // pred_check
          %p260 = pneg %p124
        $region38: #{tpu_custom_call.1} parent=31 // pred_check_branch
          %262 = sbr.rel (%p260) target = $region40
        $region39: #{tpu_custom_call.1} parent=31 // pred_region
          %264 = vsyncadd %s256, 0
          %s265 = smul.addr %s26, 4
          %s266 = sadd.s32 %s27, %s265
          %s267 = smul.addr %s266, 2
          %s268 = scalar_lea.hbm %s3, %s267
          %s269 = sshll.u32 %s259, 4
          %s270 = int_to_ptr.vmem [resolvable:$true] %s269
          %s271 = sshll.u32 %s268, 4
          %s272 = int_to_ptr.hbm [resolvable:$true] %s271
          %277 = dma.vmem_to_hbm [thread:$0]  %s270, 128, %s272, %s256, 32, 32, 2
        $region40: #{tpu_custom_call.1} parent=31 // pred_fallthru
          _
      $region32: #{tpu_custom_call.1} parent=5 // pred_fallthru
        _
      %p278 = scmp.le.s32.totalorder 2, %s17
      // Predicated region
      $region41: #{tpu_custom_call.1} parent=5 // pred_check
        %p279 = pneg %p278
      $region42: #{tpu_custom_call.1} parent=5 // pred_check_branch
        %281 = sbr.rel (%p279) target = $region44
      $region43: #{tpu_custom_call.1} parent=5 // pred_region
        %s282 = ssub.s32 %s17, 2
        // Predicated region
        $region45: #{tpu_custom_call.1} parent=43 // pred_check
          %p283 = pneg %p130
        $region46: #{tpu_custom_call.1} parent=43 // pred_check_branch
          %285 = sbr.rel (%p283) target = $region48
        $region47: #{tpu_custom_call.1} parent=43 // pred_region
          %s286 = sand.u32 %s115, 1
          %s287 = scalar_lea.sflag [#allocation6], %s286
          %s288 = sand.u32 %s115, 1
          %s289 = smul.addr %s288, 8
          %s290 = scalar_lea.vmem [#allocation7], %s289
          %292 = dma.done %s287, 128
        $region48: #{tpu_custom_call.1} parent=43 // pred_fallthru
          _
      $region44: #{tpu_custom_call.1} parent=5 // pred_fallthru
        _
    $region6: #{tpu_custom_call.1} parent=1 // loop_footer
      %s21 = sadd.s32 1, %s17
    $region7: #{tpu_custom_call.1} parent=1 // loop_footer_branch
      %16 = sbr.rel target = $region3
    $region8: #{tpu_custom_call.1} parent=1 // loop_exit
      _
    %293 = vsyncpa [#allocation5], 1
    %s294 = scalar_lea.sflag [#allocation5], 1
    %295 = vsyncpa %s294, 1
    %296 = vsyncpa [#allocation6], 1
    %s297 = scalar_lea.sflag [#allocation6], 1
    %298 = vsyncpa %s297, 1

</llo_original>
